<compile_context>
chip_gen: v6e
topology: v6e:2x2x1
jax: 0.10.0
libtpu: 0.0.40
codegen_flags: <defaults>
</compile_context>

<pallas_src>
import functools
import math

import jax
import jax.numpy as jnp
from jax.experimental import pallas as pl
from jax.experimental.pallas import tpu as pltpu


def _default_vmem_limit():
    # Query per-core VMEM and leave headroom for Mosaic scratch / semaphores /
    # the double-buffered pipeline.  Clamp: >=32 MiB, <=112 MiB (128 MiB parts).
    try:
        cap = int(pltpu.get_tpu_info().vmem_capacity_bytes)
        return min(max(cap - (16 << 20), 32 << 20), 112 << 20)
    except Exception:
        return 64 << 20


_VMEM_LIMIT = _default_vmem_limit()
_WEIGHT_RESIDENT_BYTES = 16 << 20   # keep K un-tiled if the whole weight fits this
_SINGLE_BUFFER_BYTES = 4 << 20      # single-buffer resident weights bigger than this


def _round_up(x, m):
    return ((x + m - 1) // m) * m


def _pick_tile(size, target, align):
    """Largest divisor of `size` that is <= target and a multiple of `align`,
    falling back to the full size (always legal: block == full dim)."""
    if size <= target:
        return size
    for t in range(min(target, size), 0, -1):
        if size % t == 0 and t % align == 0:
            return t
    return size


def _choose_m_tile(m, target):
    """Pick a 16-aligned M tile; returns (tile, padded_M)."""
    m16 = _round_up(m, 16)
    if m16 <= target:
        return m16, m16
    for tm in range(target, 127, -16):          # prefer big, 16-aligned divisors
        if m16 % tm == 0:
            return tm, m16
    return target, _round_up(m16, target)       # pad M rather than degrade to tiny tiles


# -------------------- tiled matmul + bias/ReLU/LayerNorm epilogue --------------------

def _linear_kernel(*refs, relu, has_ln, eps):
    x_ref, w_ref, b_ref = refs[0], refs[1], refs[2]
    idx = 3
    g_ref = bt_ref = None
    if has_ln:
        g_ref, bt_ref = refs[idx], refs[idx + 1]
        idx += 2
    o_ref, acc_ref = refs[idx], refs[idx + 1]

    k = pl.program_id(1)

    @pl.when(k == 0)
    def _init():
        acc_ref[...] = jnp.zeros_like(acc_ref)

    acc_ref[...] += jnp.dot(x_ref[...], w_ref[...],
                            preferred_element_type=jnp.float32)

    @pl.when(k == pl.num_programs(1) - 1)
    def _finalize():
        y = acc_ref[...] + b_ref[...]
        if relu:
            y = jnp.maximum(y, 0.0)
        if has_ln:
            mu = jnp.mean(y, axis=-1, keepdims=True)
            var = jnp.mean(jnp.square(y - mu), axis=-1, keepdims=True)
            y = (y - mu) * jax.lax.rsqrt(var + eps) * g_ref[...] + bt_ref[...]
        o_ref[...] = y.astype(o_ref.dtype)


def fused_linear(x, w, b, *, relu=False, ln=None, eps=1e-5,
                 out_dtype=jnp.bfloat16, tm_target=512, tk_target=2048):
    m, kdim = x.shape
    dout = w.shape[1]
    w_itemsize = jnp.dtype(w.dtype).itemsize

    # --- M tiling: 16-aligned tiles, pad M up so tiling never degenerates.
    tm, m_pad = _choose_m_tile(m, tm_target)
    if m_pad != m:
        x = jnp.pad(x, ((0, m_pad - m), (0, 0)))

    # --- K tiling: keep the weight resident (single K step) whenever it fits;
    # only tile K (padded to a 128 multiple) for the huge gene-count weight.
    if kdim * dout * w_itemsize <= _WEIGHT_RESIDENT_BYTES or kdim <= tk_target:
        tk, k_pad = kdim, kdim
    else:
        k_pad = _round_up(kdim, 128)
        if k_pad != kdim:
            x = jnp.pad(x, ((0, 0), (0, k_pad - kdim)))
            w = jnp.pad(w, ((0, k_pad - kdim), (0, 0)))
        tk = _pick_tile(k_pad, tk_target, 128)

    grid = (m_pad // tm, k_pad // tk)

    # A constant-index resident weight gains nothing from double-buffering; reclaim
    # the second buffer when it is large (matters on v7x's 64 MiB VMEM).
    w_spec_kwargs = {}
    if grid[1] == 1 and tk * dout * w_itemsize > _SINGLE_BUFFER_BYTES:
        w_spec_kwargs["pipeline_mode"] = pl.Buffered(1)
    # TODO(synk): optionally store the gene-count weight in fp8 (per-column scale
    # folded into the f32 epilogue) on v7x to halve its VMEM block.

    arrays = [x, w, b.reshape(1, dout).astype(jnp.float32)]
    in_specs = [
        pl.BlockSpec((tm, tk), lambda i, k: (i, k)),
        pl.BlockSpec((tk, dout), lambda i, k: (k, 0), **w_spec_kwargs),
        pl.BlockSpec((1, dout), lambda i, k: (0, 0)),
    ]
    has_ln = ln is not None
    if has_ln:
        g, bt = ln
        arrays += [g.reshape(1, dout).astype(jnp.float32),
                   bt.reshape(1, dout).astype(jnp.float32)]
        in_specs += [pl.BlockSpec((1, dout), lambda i, k: (0, 0)),
                     pl.BlockSpec((1, dout), lambda i, k: (0, 0))]

    out = pl.pallas_call(
        functools.partial(_linear_kernel, relu=relu, has_ln=has_ln, eps=eps),
        out_shape=jax.ShapeDtypeStruct((m_pad, dout), out_dtype),
        grid=grid,
        in_specs=in_specs,
        out_specs=pl.BlockSpec((tm, dout), lambda i, k: (i, 0)),
        scratch_shapes=[pltpu.VMEM((tm, dout), jnp.float32)],
        compiler_params=pltpu.CompilerParams(
            dimension_semantics=("parallel", "arbitrary"),
            vmem_limit_bytes=_VMEM_LIMIT),
    )(*arrays)
    return out[:m] if m_pad != m else out


# ---------- fused MHA sublayer: QKV + attention + proj + add&LN, q-tiled ----------

def _mha_kernel(hq_ref, h_ref, wq_ref, bq_ref, wk_ref, bk_ref, wv_ref, bv_ref,
                wo_ref, bo_ref, g_ref, bt_ref, kbias_ref, o_ref,
                k_scr, v_scr, *, nhead, eps):
    hq = hq_ref[0]                                  # (tq, dim) bf16 query-tile rows
    tq, dim = hq.shape
    n = k_scr.shape[0]
    dh = dim // nhead

    # K/V projection once per batch element (qi axis is sequential -> scratch reuse).
    @pl.when(pl.program_id(1) == 0)
    def _project_kv():
        hf = h_ref[0]                               # (n, dim) full sequence
        k = jnp.dot(hf, wk_ref[...], preferred_element_type=jnp.float32) + bk_ref[...]
        v = jnp.dot(hf, wv_ref[...], preferred_element_type=jnp.float32) + bv_ref[...]
        k_scr[...] = k.astype(k_scr.dtype)
        v_scr[...] = v.astype(v_scr.dtype)

    # Q projection for this query tile (softmax 1/sqrt(dh) already folded into Wq).
    q = (jnp.dot(hq, wq_ref[...], preferred_element_type=jnp.float32)
         + bq_ref[...]).astype(hq.dtype)            # (tq, dim)

    # Single batched-head relayout instead of per-head 16-lane slices + concat.
    qh = q.reshape(tq, nhead, dh)
    kh = k_scr[...].reshape(n, nhead, dh)
    vh = v_scr[...].reshape(n, nhead, dh)

    s = jnp.einsum('qhd,khd->hqk', qh, kh,
                   preferred_element_type=jnp.float32)          # (nhead, tq, n)
    s = s + kbias_ref[...].reshape(1, 1, n)                     # key-padding bias
    mx = jnp.max(s, axis=-1, keepdims=True)
    p = jnp.exp(s - mx)
    p = p * pl.reciprocal(jnp.sum(p, axis=-1, keepdims=True), approx=True)
    oh = jnp.einsum('hqk,khd->qhd', p.astype(hq.dtype), vh,
                    preferred_element_type=jnp.float32)         # (tq, nhead, dh)
    attn = oh.reshape(tq, dim).astype(hq.dtype)

    y = jnp.dot(attn, wo_ref[...], preferred_element_type=jnp.float32) + bo_ref[...]
    y = y + hq.astype(jnp.float32)                              # residual
    mu = jnp.mean(y, axis=-1, keepdims=True)
    var = jnp.mean(jnp.square(y - mu), axis=-1, keepdims=True)
    y = (y - mu) * jax.lax.rsqrt(var + eps) * g_ref[...] + bt_ref[...]
    o_ref[0] = y.astype(o_ref.dtype)


def fused_mha(h, wq, bq, wk, bk, wv, bv, wo, bo, gamma, beta, kbias, *,
              nhead, eps=1e-5, tq_target=256):
    b, n, dim = h.shape
    tq = _pick_tile(n, tq_target, 16)               # falls back to full n if needed
    grid = (b, n // tq)
    # TODO(synk): for extremely long sequences also tile the KV axis with an online
    # softmax so the (nhead, tq, N) score block stays bounded on v7x.

    f32 = jnp.float32
    return pl.pallas_call(
        functools.partial(_mha_kernel, nhead=nhead, eps=eps),
        out_shape=jax.ShapeDtypeStruct((b, n, dim), h.dtype),
        grid=grid,
        in_specs=[
            pl.BlockSpec((1, tq, dim), lambda i, j: (i, j, 0)),   # query tile of h
            pl.BlockSpec((1, n, dim), lambda i, j: (i, 0, 0)),    # full sequence of h
            pl.BlockSpec((dim, dim), lambda i, j: (0, 0)),        # wq
            pl.BlockSpec((1, dim), lambda i, j: (0, 0)),          # bq
            pl.BlockSpec((dim, dim), lambda i, j: (0, 0)),        # wk
            pl.BlockSpec((1, dim), lambda i, j: (0, 0)),          # bk
            pl.BlockSpec((dim, dim), lambda i, j: (0, 0)),        # wv
            pl.BlockSpec((1, dim), lambda i, j: (0, 0)),          # bv
            pl.BlockSpec((dim, dim), lambda i, j: (0, 0)),        # wo
            pl.BlockSpec((1, dim), lambda i, j: (0, 0)),          # bo
            pl.BlockSpec((1, dim), lambda i, j: (0, 0)),          # ln gamma
            pl.BlockSpec((1, dim), lambda i, j: (0, 0)),          # ln beta
            pl.BlockSpec((1, n), lambda i, j: (i, 0)),            # key-padding bias
        ],
        out_specs=pl.BlockSpec((1, tq, dim), lambda i, j: (i, j, 0)),
        scratch_shapes=[pltpu.VMEM((n, dim), h.dtype),            # K scratch
                        pltpu.VMEM((n, dim), h.dtype)],           # V scratch
        compiler_params=pltpu.CompilerParams(
            dimension_semantics=("parallel", "arbitrary"),
            vmem_limit_bytes=_VMEM_LIMIT),
    )(h, h, wq, bq.reshape(1, dim).astype(f32), wk, bk.reshape(1, dim).astype(f32),
      wv, bv.reshape(1, dim).astype(f32), wo, bo.reshape(1, dim).astype(f32),
      gamma.reshape(1, dim).astype(f32), beta.reshape(1, dim).astype(f32), kbias)


# -------------------- fused FFN sublayer: linear+ReLU+linear + add&LN --------------------

def _ffn_kernel(x_ref, w1_ref, b1_ref, w2_ref, b2_ref, g_ref, bt_ref, o_ref, *, eps):
    x = x_ref[...]                                                    # (tm, dim) bf16
    hdn = jnp.dot(x, w1_ref[...], preferred_element_type=jnp.float32) + b1_ref[...]
    hdn = jnp.maximum(hdn, 0.0).astype(x.dtype)
    y = jnp.dot(hdn, w2_ref[...], preferred_element_type=jnp.float32) + b2_ref[...]
    y = y + x.astype(jnp.float32)                                     # residual
    mu = jnp.mean(y, axis=-1, keepdims=True)
    var = jnp.mean(jnp.square(y - mu), axis=-1, keepdims=True)
    y = (y - mu) * jax.lax.rsqrt(var + eps) * g_ref[...] + bt_ref[...]
    o_ref[...] = y.astype(o_ref.dtype)


def fused_ffn(x, w1, b1, w2, b2, gamma, beta, *, eps=1e-5, tm_target=512):
    m, dim = x.shape
    ff = w1.shape[1]
    tm, m_pad = _choose_m_tile(m, tm_target)
    if m_pad != m:
        x = jnp.pad(x, ((0, m_pad - m), (0, 0)))
    out = pl.pallas_call(
        functools.partial(_ffn_kernel, eps=eps),
        out_shape=jax.ShapeDtypeStruct((m_pad, dim), x.dtype),
        grid=(m_pad // tm,),
        in_specs=[
            pl.BlockSpec((tm, dim), lambda i: (i, 0)),
            pl.BlockSpec((dim, ff), lambda i: (0, 0)),
            pl.BlockSpec((1, ff), lambda i: (0, 0)),
            pl.BlockSpec((ff, dim), lambda i: (0, 0)),
            pl.BlockSpec((1, dim), lambda i: (0, 0)),
            pl.BlockSpec((1, dim), lambda i: (0, 0)),
            pl.BlockSpec((1, dim), lambda i: (0, 0)),
        ],
        out_specs=pl.BlockSpec((tm, dim), lambda i: (i, 0)),
        compiler_params=pltpu.CompilerParams(
            dimension_semantics=("parallel",),
            vmem_limit_bytes=_VMEM_LIMIT),
    )(x, w1, b1.reshape(1, ff).astype(jnp.float32), w2,
      b2.reshape(1, dim).astype(jnp.float32),
      gamma.reshape(1, dim).astype(jnp.float32),
      beta.reshape(1, dim).astype(jnp.float32))
    return out[:m] if m_pad != m else out


# -------------------- fused final-LayerNorm + masked mean pooling --------------------

def _pool_kernel(h_ref, v_ref, g_ref, bt_ref, o_ref, *, eps):
    h = h_ref[...].astype(jnp.float32)                        # (Bt, N, D)
    mu = jnp.mean(h, axis=-1, keepdims=True)
    var = jnp.mean(jnp.square(h - mu), axis=-1, keepdims=True)
    y = (h - mu) * jax.lax.rsqrt(var + eps) * g_ref[...] + bt_ref[...]
    valid = v_ref[...]                                         # (Bt, 1, N) lane-major
    # Masked sum over cells as a batched mat-vec on the MXU.
    s = jax.lax.dot_general(valid, y, (((2,), (1,)), ((0,), (0,))),
                            preferred_element_type=jnp.float32)   # (Bt, 1, D)
    cnt = jnp.sum(valid, axis=-1, keepdims=True)               # (Bt, 1, 1)
    o_ref[...] = (s / (cnt + 1e-8))[:, 0, :]


def fused_ln_masked_mean(h, valid, gamma, beta, *, eps=1e-5, bt_target=8):
    b, n, d = h.shape
    bt = _pick_tile(b, bt_target, 1)
    return pl.pallas_call(
        functools.partial(_pool_kernel, eps=eps),
        out_shape=jax.ShapeDtypeStruct((b, d), jnp.float32),
        grid=(b // bt,),
        in_specs=[
            pl.BlockSpec((bt, n, d), lambda i: (i, 0, 0)),
            pl.BlockSpec((bt, 1, n), lambda i: (i, 0, 0)),
            pl.BlockSpec((1, d), lambda i: (0, 0)),
            pl.BlockSpec((1, d), lambda i: (0, 0)),
        ],
        out_specs=pl.BlockSpec((bt, d), lambda i: (i, 0)),
        compiler_params=pltpu.CompilerParams(
            dimension_semantics=("parallel",),
            vmem_limit_bytes=_VMEM_LIMIT),
    )(h, valid.reshape(b, 1, n).astype(jnp.float32),
      gamma.reshape(1, d).astype(jnp.float32),
      beta.reshape(1, d).astype(jnp.float32))


# ----------------------------- parameters ----------------------------------

def init_params(key, gene_count, h1, h2, dim, ff, nlayers, nhead):
    dh = dim // nhead
    scale = 1.0 / math.sqrt(dh)

    def dense(k, din, dout):
        k1, k2 = jax.random.split(k)
        w = jax.random.normal(k1, (din, dout), jnp.float32) / math.sqrt(din)
        b = 0.01 * jax.random.normal(k2, (dout,), jnp.float32)
        return w, b

    keys = jax.random.split(key, 6 + nlayers)
    p = {}
    w, b = dense(keys[0], gene_count, h1)
    p["mlp_w1"], p["mlp_b1"] = w.astype(jnp.bfloat16), b
    p["mlp_ln1_g"], p["mlp_ln1_b"] = jnp.ones((h1,)), jnp.zeros((h1,))
    w, b = dense(keys[1], h1, h2)
    p["mlp_w2"], p["mlp_b2"] = w.astype(jnp.bfloat16), b
    p["mlp_ln2_g"], p["mlp_ln2_b"] = jnp.ones((h2,)), jnp.zeros((h2,))
    w, b = dense(keys[2], h2, dim)
    p["mlp_w3"], p["mlp_b3"] = w.astype(jnp.bfloat16), b
    p["mlp_ln3_g"], p["mlp_ln3_b"] = jnp.ones((dim,)), jnp.zeros((dim,))

    layers = []
    for li in range(nlayers):
        lk = jax.random.split(keys[3 + li], 6)
        wq, bq = dense(lk[0], dim, dim)
        wk, bk = dense(lk[1], dim, dim)
        wv, bv = dense(lk[2], dim, dim)
        lp = {}
        # 1/sqrt(dh) softmax scale folded into the Q projection.
        lp["wq"], lp["bq"] = (wq * scale).astype(jnp.bfloat16), bq * scale
        lp["wk"], lp["bk"] = wk.astype(jnp.bfloat16), bk
        lp["wv"], lp["bv"] = wv.astype(jnp.bfloat16), bv
        wo, bo = dense(lk[3], dim, dim)
        lp["wo"], lp["bo"] = wo.astype(jnp.bfloat16), bo
        lp["ln1_g"], lp["ln1_b"] = jnp.ones((dim,)), jnp.zeros((dim,))
        w1, b1 = dense(lk[4], dim, ff)
        w2, b2 = dense(lk[5], ff, dim)
        lp["wff1"], lp["bff1"] = w1.astype(jnp.bfloat16), b1
        lp["wff2"], lp["bff2"] = w2.astype(jnp.bfloat16), b2
        lp["ln2_g"], lp["ln2_b"] = jnp.ones((dim,)), jnp.zeros((dim,))
        layers.append(lp)
    p["layers"] = layers
    p["final_ln_g"], p["final_ln_b"] = jnp.ones((dim,)), jnp.zeros((dim,))

    p["meta_w"], p["meta_b"] = dense(keys[3 + nlayers], 3, 1)
    p["out_w"], p["out_b"] = dense(keys[4 + nlayers], dim + 1, 1)
    p["cls_w"], p["cls_b"] = dense(keys[5 + nlayers], dim + 1, 1)
    return p


# ----------------------------- forward --------------------------------------

def transformer_model_forward(params, cell_matrix, meta, mask, nhead, mode="inference"):
    B, N, G = cell_matrix.shape
    dim = params["final_ln_g"].shape[0]

    valid_f = (~mask).astype(jnp.float32)                        # 1.0 == valid cell
    kbias = jnp.where(mask, -1e30, 0.0).astype(jnp.float32)      # additive key mask

    # ---- cell_mlp on flattened cells (Linear+ReLU+LN fused per stage)
    # TODO(synk): input cast to bf16 for MXU throughput; PyTorch runs this matmul in f32.
    x = cell_matrix.reshape(B * N, G).astype(jnp.bfloat16)
    x = fused_linear(x, params["mlp_w1"], params["mlp_b1"], relu=True,
                     ln=(params["mlp_ln1_g"], params["mlp_ln1_b"]))
    x = fused_linear(x, params["mlp_w2"], params["mlp_b2"], relu=True,
                     ln=(params["mlp_ln2_g"], params["mlp_ln2_b"]))
    x = fused_linear(x, params["mlp_w3"], params["mlp_b3"],
                     ln=(params["mlp_ln3_g"], params["mlp_ln3_b"]))

    # ---- post-norm TransformerEncoder: 2 fused kernels per layer
    # TODO(synk): dropout in nn.TransformerEncoderLayer is identity in eval mode; omitted.
    h = x
    for lp in params["layers"]:
        h3 = fused_mha(h.reshape(B, N, dim), lp["wq"], lp["bq"], lp["wk"], lp["bk"],
                       lp["wv"], lp["bv"], lp["wo"], lp["bo"],
                       lp["ln1_g"], lp["ln1_b"], kbias, nhead=nhead)
        h = fused_ffn(h3.reshape(B * N, dim), lp["wff1"], lp["bff1"],
                      lp["wff2"], lp["bff2"], lp["ln2_g"], lp["ln2_b"])

    # ---- final encoder LayerNorm fused with masked mean pooling
    pooled = fused_ln_masked_mean(h.reshape(B, N, dim), valid_f,
                                  params["final_ln_g"], params["final_ln_b"])

    # ---- tiny heads in plain JAX (dim-1 outputs are lane-sparse; launch-bound in Pallas)
    meta_embed = meta.astype(jnp.float32) @ params["meta_w"] + params["meta_b"]
    combined = jnp.concatenate([meta_embed, pooled], axis=1)     # (B, dim+1)
    fev1_pred = combined @ params["out_w"] + params["out_b"]
    class_pred = combined @ params["cls_w"] + params["cls_b"]

    if mode in ("training", "inference"):
        return fev1_pred, class_pred
    elif mode == "extract":
        return fev1_pred, class_pred, combined
    else:
        raise ValueError(f"Invalid mode: {mode}.")


# ----------------------------- main ------------------------------------------

if __name__ == "__main__":
    # Small, module-consistent hyperparameters (original: gene_count=3825, dim=128,
    # hidden 2048/512, ffn 2048, 8 heads, 8 layers). dim=128 kept so the per-head
    # reshape (N, 8, 16) matches the production layout.
    B, N = 2, 8
    GENE_COUNT, H1, H2, DIM, FF, NHEAD, NLAYERS = 64, 128, 64, 128, 256, 8, 2

    key = jax.random.PRNGKey(0)
    kp, kx, km = jax.random.split(key, 3)
    params = init_params(kp, GENE_COUNT, H1, H2, DIM, FF, NLAYERS, NHEAD)

    cell_matrix = jax.random.normal(kx, (B, N, GENE_COUNT), jnp.float32)
    meta = jax.random.normal(km, (B, 3), jnp.float32)
    # True == padded cell (same convention as PyTorch src_key_padding_mask)
    mask = jnp.array([[False] * 5 + [True] * 3,
                      [False] * 7 + [True]], dtype=bool)

    fev1_pred, class_pred = transformer_model_forward(
        params, cell_matrix, meta, mask, NHEAD, mode="inference")
    jax.block_until_ready((fev1_pred, class_pred))

    assert fev1_pred.shape == (B, 1) and class_pred.shape == (B, 1)
    assert bool(jnp.all(jnp.isfinite(fev1_pred))) and bool(jnp.all(jnp.isfinite(class_pred)))
    print("KERNEL_OK")
</pallas_src>

<mosaic_0001>
module attributes {stable_mosaic.version = 11 : i64} {
  func.func @_linear_kernel(%arg0: i32, %arg1: i32, %arg2: memref<16x64xbf16, #tpu.memory_space<vmem>>, %arg3: memref<64x128xbf16, #tpu.memory_space<vmem>>, %arg4: memref<1x128xf32, #tpu.memory_space<vmem>>, %arg5: memref<1x128xf32, #tpu.memory_space<vmem>>, %arg6: memref<1x128xf32, #tpu.memory_space<vmem>>, %arg7: memref<16x128xbf16, #tpu.memory_space<vmem>>, %arg8: memref<16x128xf32, #tpu.memory_space<vmem>>) attributes {dimension_semantics = [#tpu.dimension_semantics<parallel>, #tpu.dimension_semantics<arbitrary>], iteration_bounds = array<i64: 1, 1>, scalar_prefetch = 0 : i64, scratch_operands = 1 : i64, tpu.core_type = #tpu.core_type<tc>, window_params = [{transform_indices = @transform_0, window_bounds = array<i64: 16, 64>}, {transform_indices = @transform_1, window_bounds = array<i64: 64, 128>}, {pipeline_mode = #tpu.pipeline_mode<synchronous>, transform_indices = @transform_2, window_bounds = array<i64: 1, 128>}, {pipeline_mode = #tpu.pipeline_mode<synchronous>, transform_indices = @transform_3, window_bounds = array<i64: 1, 128>}, {pipeline_mode = #tpu.pipeline_mode<synchronous>, transform_indices = @transform_4, window_bounds = array<i64: 1, 128>}, {transform_indices = @transform_5, window_bounds = array<i64: 16, 128>}]} {
    %c0_i32 = arith.constant 0 : i32
    %0 = arith.cmpi eq, %arg1, %c0_i32 : i32
    %1 = arith.extui %0 : i1 to i32
    %c0_i32_0 = arith.constant 0 : i32
    %2 = arith.cmpi ne, %1, %c0_i32_0 : i32
    scf.if %2 {
      %cst_10 = arith.constant 0.000000e+00 : f32
      %12 = vector.broadcast %cst_10 : f32 to vector<16x128xf32>
      %c0_11 = arith.constant 0 : index
      %c0_12 = arith.constant 0 : index
      %13 = vector.load %arg8[%c0_11, %c0_12] : memref<16x128xf32, #tpu.memory_space<vmem>>, vector<16x128xf32>
      tpu.vector_store %arg8[%c0_11, %c0_12], %12 {strides = array<i32>} : memref<16x128xf32, #tpu.memory_space<vmem>>, vector<16x128xf32>,
    } else {
    }
    %c0 = arith.constant 0 : index
    %c0_1 = arith.constant 0 : index
    %3 = vector.load %arg8[%c0, %c0_1] : memref<16x128xf32, #tpu.memory_space<vmem>>, vector<16x128xf32>
    %c0_2 = arith.constant 0 : index
    %c0_3 = arith.constant 0 : index
    %4 = vector.load %arg2[%c0_2, %c0_3] : memref<16x64xbf16, #tpu.memory_space<vmem>>, vector<16x64xbf16>
    %c0_4 = arith.constant 0 : index
    %c0_5 = arith.constant 0 : index
    %5 = vector.load %arg3[%c0_4, %c0_5] : memref<64x128xbf16, #tpu.memory_space<vmem>>, vector<64x128xbf16>
    %cst = arith.constant dense<0.000000e+00> : vector<16x128xf32>
    %6 = tpu.matmul %4, %5, %cst {dimension_numbers = #tpu.dot_dimension_numbers<[1], [0], [0], [1], [0, 0, 1, 1], [], []>} : vector<16x64xbf16>, vector<64x128xbf16>, vector<16x128xf32> -> vector<16x128xf32>
    %7 = arith.addf %3, %6 : vector<16x128xf32>
    %c0_6 = arith.constant 0 : index
    %c0_7 = arith.constant 0 : index
    %8 = vector.load %arg8[%c0_6, %c0_7] : memref<16x128xf32, #tpu.memory_space<vmem>>, vector<16x128xf32>
    tpu.vector_store %arg8[%c0_6, %c0_7], %7 {strides = array<i32>} : memref<16x128xf32, #tpu.memory_space<vmem>>, vector<16x128xf32>,
    %c0_i32_8 = arith.constant 0 : i32
    %9 = arith.cmpi eq, %arg1, %c0_i32_8 : i32
    %10 = arith.extui %9 : i1 to i32
    %c0_i32_9 = arith.constant 0 : i32
    %11 = arith.cmpi ne, %10, %c0_i32_9 : i32
    scf.if %11 {
      %c0_10 = arith.constant 0 : index
      %c0_11 = arith.constant 0 : index
      %12 = vector.load %arg8[%c0_10, %c0_11] : memref<16x128xf32, #tpu.memory_space<vmem>>, vector<16x128xf32>
      %c0_12 = arith.constant 0 : index
      %c0_13 = arith.constant 0 : index
      %13 = vector.load %arg4[%c0_12, %c0_13] : memref<1x128xf32, #tpu.memory_space<vmem>>, vector<1x128xf32>
      %14 = vector.broadcast %13 : vector<1x128xf32> to vector<16x128xf32>
      %15 = arith.addf %12, %14 : vector<16x128xf32>
      %cst_14 = arith.constant 0.000000e+00 : f32
      %16 = vector.broadcast %cst_14 : f32 to vector<16x128xf32>
      %17 = arith.maximumf %15, %16 : vector<16x128xf32>
      %cst_15 = arith.constant dense<0.000000e+00> : vector<16xf32>
      %18 = vector.multi_reduction <add>, %17, %cst_15 [1] : vector<16x128xf32> to vector<16xf32>
      %19 = vector.shape_cast %18 : vector<16xf32> to vector<16x1xf32>
      %cst_16 = arith.constant 1.280000e+02 : f32
      %20 = vector.broadcast %cst_16 : f32 to vector<16x1xf32>
      %21 = arith.divf %19, %20 : vector<16x1xf32>
      %22 = vector.broadcast %21 : vector<16x1xf32> to vector<16x128xf32>
      %23 = arith.subf %17, %22 : vector<16x128xf32>
      %24 = arith.mulf %23, %23 : vector<16x128xf32>
      %cst_17 = arith.constant dense<0.000000e+00> : vector<16xf32>
      %25 = vector.multi_reduction <add>, %24, %cst_17 [1] : vector<16x128xf32> to vector<16xf32>
      %26 = vector.shape_cast %25 : vector<16xf32> to vector<16x1xf32>
      %cst_18 = arith.constant 1.280000e+02 : f32
      %27 = vector.broadcast %cst_18 : f32 to vector<16x1xf32>
      %28 = arith.divf %26, %27 : vector<16x1xf32>
      %29 = vector.broadcast %21 : vector<16x1xf32> to vector<16x128xf32>
      %30 = arith.subf %17, %29 : vector<16x128xf32>
      %cst_19 = arith.constant 9.99999974E-6 : f32
      %31 = vector.broadcast %cst_19 : f32 to vector<16x1xf32>
      %32 = arith.addf %28, %31 : vector<16x1xf32>
      %33 = math.rsqrt %32 : vector<16x1xf32>
      %34 = vector.broadcast %33 : vector<16x1xf32> to vector<16x128xf32>
      %35 = arith.mulf %30, %34 : vector<16x128xf32>
      %c0_20 = arith.constant 0 : index
      %c0_21 = arith.constant 0 : index
      %36 = vector.load %arg5[%c0_20, %c0_21] : memref<1x128xf32, #tpu.memory_space<vmem>>, vector<1x128xf32>
      %37 = vector.broadcast %36 : vector<1x128xf32> to vector<16x128xf32>
      %38 = arith.mulf %35, %37 : vector<16x128xf32>
      %c0_22 = arith.constant 0 : index
      %c0_23 = arith.constant 0 : index
      %39 = vector.load %arg6[%c0_22, %c0_23] : memref<1x128xf32, #tpu.memory_space<vmem>>, vector<1x128xf32>
      %40 = vector.broadcast %39 : vector<1x128xf32> to vector<16x128xf32>
      %41 = arith.addf %38, %40 : vector<16x128xf32>
      %42 = arith.truncf %41 : vector<16x128xf32> to vector<16x128xbf16>
      %c0_24 = arith.constant 0 : index
      %c0_25 = arith.constant 0 : index
      %43 = vector.load %arg7[%c0_24, %c0_25] : memref<16x128xbf16, #tpu.memory_space<vmem>>, vector<16x128xbf16>
      tpu.vector_store %arg7[%c0_24, %c0_25], %42 {strides = array<i32>} : memref<16x128xbf16, #tpu.memory_space<vmem>>, vector<16x128xbf16>,
    } else {
    }
    return
  }
  func.func @transform_0(%arg0: i32, %arg1: i32) -> (i32, i32) {
    %c0_i32 = arith.constant 0 : i32
    return %arg0, %arg1 : i32, i32
  }
  func.func @transform_1(%arg0: i32, %arg1: i32) -> (i32, i32) {
    %c0_i32 = arith.constant 0 : i32
    %c0_i32_0 = arith.constant 0 : i32
    return %arg1, %c0_i32 : i32, i32
  }
  func.func @transform_2(%arg0: i32, %arg1: i32) -> (i32, i32) {
    %c0_i32 = arith.constant 0 : i32
    %c0_i32_0 = arith.constant 0 : i32
    %c0_i32_1 = arith.constant 0 : i32
    return %c0_i32, %c0_i32_0 : i32, i32
  }
  func.func @transform_3(%arg0: i32, %arg1: i32) -> (i32, i32) {
    %c0_i32 = arith.constant 0 : i32
    %c0_i32_0 = arith.constant 0 : i32
    %c0_i32_1 = arith.constant 0 : i32
    return %c0_i32, %c0_i32_0 : i32, i32
  }
  func.func @transform_4(%arg0: i32, %arg1: i32) -> (i32, i32) {
    %c0_i32 = arith.constant 0 : i32
    %c0_i32_0 = arith.constant 0 : i32
    %c0_i32_1 = arith.constant 0 : i32
    return %c0_i32, %c0_i32_0 : i32, i32
  }
  func.func @transform_5(%arg0: i32, %arg1: i32) -> (i32, i32) {
    %c0_i32 = arith.constant 0 : i32
    %c0_i32_0 = arith.constant 0 : i32
    return %arg0, %c0_i32 : i32, i32
  }
}

</mosaic_0001>

<llo_original>
// kernel: tpu_custom_call.1
$region0: #{tpu_custom_call.1}
  #allocation0 [shape = 'u32[]', space=smem, size = 0x4, offset = 0x4, fixed_abs, tag = 'smem constant byte address 0x4 - core index']
  #allocation1 [shape = 'u32[144,128]{1,0:T(1,128)}', space=vmem, size = 0x12000, scoped, tag = 'internal scratch']
  #allocation2 [shape = 'f32[16,128]{1,0:T(8,128)}', space=vmem, size = 0x2000, scoped, tag = 'scratch operand']
  %s0 = inlined_call_operand.hbm [shape: bf16[16,64], index: 0, kind: input, shape index: {}]
  %s1 = inlined_call_operand.hbm [shape: bf16[64,128], index: 1, kind: input, shape index: {}]
  %s2 = inlined_call_operand.vmem [shape: f32[1,128], index: 2, kind: input, shape index: {}]
  %s3 = inlined_call_operand.vmem [shape: f32[1,128], index: 3, kind: input, shape index: {}]
  %s4 = inlined_call_operand.vmem [shape: f32[1,128], index: 4, kind: input, shape index: {}]
  %s5 = inlined_call_operand.hbm [shape: bf16[16,128], index: 5, kind: output, shape index: {}]
  %s6 = sld [smem:[#allocation0]]
  $region46: #{tpu_custom_call.1} parent=0
    _
  %s8 = ssub.s32 1, %s6
  %s9 = scalar_select 0, %s8, %s6
  $region1: #{tpu_custom_call.1} parent=0
    #allocation3 [shape = 'u8[4096]{0}', space=vmem, size = 0x1000, scoped, tag = 'input window, operand 0, single buffered']
    #allocation4 [shape = 's32[1]{0}', space=sflag, size = 0x4, scoped, tag = 'scoped memory for tpu_custom_call.1']
    #allocation5 [shape = 's32[1]{0}', space=sflag, size = 0x4, scoped, tag = 'scoped memory for tpu_custom_call.1']
    #allocation6 [shape = 'u8[16384]{0}', space=vmem, size = 0x4000, scoped, tag = 'input window, operand 1, single buffered']
    #allocation7 [shape = 's32[1]{0}', space=sflag, size = 0x4, scoped, tag = 'scoped memory for tpu_custom_call.1']
    #allocation8 [shape = 'u8[4096]{0}', space=vmem, size = 0x1000, scoped, tag = 'output window, operand 0, single buffered']
    %10 = vsyncpa [#allocation4], 0
    %11 = vsyncpa [#allocation7], 0
    %12 = vsyncpa [#allocation5], 0
    // Predicated region
    $region2: #{tpu_custom_call.1} parent=1 // pred_check
      _
    $region3: #{tpu_custom_call.1} parent=1 // pred_check_branch
      %14 = sbr.rel (0) target = $region5
    $region4: #{tpu_custom_call.1} parent=1 // pred_region
      %s16 = ssub.s32 128, 128
      %17 = vsyncadd [#allocation4], %s16
      %s18 = sshll.u32 [#allocation3], 4
      %s19 = int_to_ptr.vmem [resolvable:$true] %s18
      %24 = dma.hbm_to_vmem [thread:$0]  %s0, 128, %s19, [#allocation4], 64, 64, 4
    $region5: #{tpu_custom_call.1} parent=1 // pred_fallthru
      _
    // Predicated region
    $region6: #{tpu_custom_call.1} parent=1 // pred_check
      _
    $region7: #{tpu_custom_call.1} parent=1 // pred_check_branch
      %26 = sbr.rel (0) target = $region9
    $region8: #{tpu_custom_call.1} parent=1 // pred_region
      %s28 = ssub.s32 512, 512
      %29 = vsyncadd [#allocation7], %s28
      %s30 = sshll.u32 [#allocation6], 4
      %s31 = int_to_ptr.vmem [resolvable:$true] %s30
      %36 = dma.hbm_to_vmem [thread:$0]  %s1, 512, %s31, [#allocation7], 64, 64, 4
    $region9: #{tpu_custom_call.1} parent=1 // pred_fallthru
      _
    // Predicated region
    $region10: #{tpu_custom_call.1} parent=1 // pred_check
      _
    $region11: #{tpu_custom_call.1} parent=1 // pred_check_branch
      %38 = sbr.rel (0) target = $region13
    $region12: #{tpu_custom_call.1} parent=1 // pred_region
      _
    $region13: #{tpu_custom_call.1} parent=1 // pred_fallthru
      _
    // Predicated region
    $region14: #{tpu_custom_call.1} parent=1 // pred_check
      _
    $region15: #{tpu_custom_call.1} parent=1 // pred_check_branch
      %40 = sbr.rel (0) target = $region17
    $region16: #{tpu_custom_call.1} parent=1 // pred_region
      _
    $region17: #{tpu_custom_call.1} parent=1 // pred_fallthru
      _
    // Predicated region
    $region18: #{tpu_custom_call.1} parent=1 // pred_check
      _
    $region19: #{tpu_custom_call.1} parent=1 // pred_check_branch
      %42 = sbr.rel (0) target = $region21
    $region20: #{tpu_custom_call.1} parent=1 // pred_region
      _
    $region21: #{tpu_custom_call.1} parent=1 // pred_fallthru
      _
    // Predicated region
    $region22: #{tpu_custom_call.1} parent=1 // pred_check
      _
    $region23: #{tpu_custom_call.1} parent=1 // pred_check_branch
      %44 = sbr.rel (0) target = $region25
    $region24: #{tpu_custom_call.1} parent=1 // pred_region
      %45 = dma.done [#allocation4], 128
    $region25: #{tpu_custom_call.1} parent=1 // pred_fallthru
      _
    // Predicated region
    $region26: #{tpu_custom_call.1} parent=1 // pred_check
      _
    $region27: #{tpu_custom_call.1} parent=1 // pred_check_branch
      %47 = sbr.rel (0) target = $region29
    $region28: #{tpu_custom_call.1} parent=1 // pred_region
      %48 = dma.done [#allocation7], 512
    $region29: #{tpu_custom_call.1} parent=1 // pred_fallthru
      _
    %p50 = scmp.eq.s32.totalorder 0, 0
    // Predicated region
    $region30: #{tpu_custom_call.1} parent=1 // pred_check
      %p51 = pneg %p50
    $region31: #{tpu_custom_call.1} parent=1 // pred_check_branch
      %53 = sbr.rel (%p51) target = $region33
    $region32: #{tpu_custom_call.1} parent=1 // pred_region
      %54 = vst [vmem:[#allocation2] sm:$0xff] 0.0
      %55 = vst [vmem:[#allocation2 + $0x8] sm:$0xff] 0.0
    $region33: #{tpu_custom_call.1} parent=1 // pred_fallthru
      _
    %v56 = vld [vmem:[#allocation2] sm:$0xff]
    %v57 = vld [vmem:[#allocation2 + $0x8] sm:$0xff]
    %v58 = vld [vmem:[#allocation3] sm:$0xf]
    %v59 = vld [vmem:[#allocation3 + $0x4] sm:$0xf]
    %v60 = vld [vmem:[#allocation6] sm:$0xf]
    %v61 = vld [vmem:[#allocation6 + $0x4] sm:$0xf]
    %v62 = vld [vmem:[#allocation6 + $0x8] sm:$0xf]
    %v63 = vld [vmem:[#allocation6 + $0xc] sm:$0xf]
    %v64 = vld [vmem:[#allocation6 + $0x10] sm:$0xf]
    %v65 = vld [vmem:[#allocation6 + $0x14] sm:$0xf]
    %v66 = vld [vmem:[#allocation6 + $0x18] sm:$0xf]
    %v67 = vld [vmem:[#allocation6 + $0x1c] sm:$0xf]
    %v70 = vunpack.c.l.b16 %v58
    %v71 = vunpack.c.l.b16 %v59
    %v72 = vpack.c.b16 %v71, %v70
    %v81 = vunpack.c.l.b16 %v60
    %v82 = vunpack.c.l.b16 %v61
    %v83 = vunpack.c.l.b16 %v62
    %v84 = vunpack.c.l.b16 %v63
    %v85 = vunpack.c.l.b16 %v64
    %v86 = vunpack.c.l.b16 %v65
    %v87 = vunpack.c.l.b16 %v66
    %v88 = vunpack.c.l.b16 %v67
    %v89 = vpack.c.b16 %v82, %v81
    %v90 = vpack.c.b16 %v84, %v83
    %v91 = vpack.c.b16 %v86, %v85
    %v92 = vpack.c.b16 %v88, %v87
    %vm97 = vcmask 523264
    %v99 = vsel %vm97, %v72, 0
    %101 = vmatprep.subr.bf16.mxu0 0
    %102 = vmatpush1.bf16.msra.mxu0 0
    %103 = vmatprep.subr.bf16.mxu0 0
    %104 = vmatpush1.bf16.msra.mxu0 0
    %105 = vmatprep.subr.bf16.mxu0 0
    %106 = vmatpush1.bf16.msra.mxu0 0
    %107 = vmatprep.subr.bf16.mxu0 0
    %108 = vmatpush1.bf16.msra.mxu0 0
    %109 = vmatprep.subr.bf16.mxu0 0
    %110 = vmatpush1.bf16.msra.mxu0 %v92
    %111 = vmatprep.subr.bf16.mxu0 0
    %112 = vmatpush1.bf16.msra.mxu0 %v91
    %113 = vmatprep.subr.bf16.mxu0 0
    %114 = vmatpush1.bf16.msra.mxu0 %v90
    %115 = vmatprep.subr.bf16.mxu0 0
    %116 = vmatpush1.bf16.msra.mxu0 %v89
    %117 = vmatprep.subr.bf16.mxu0 0
    %118 = vmatpush2.bf16.msra.mxu0 0
    %119 = vmatprep.subr.bf16.mxu0 0
    %120 = vmatpush2.bf16.msra.mxu0 0
    %121 = vmatprep.subr.bf16.mxu0 0
    %122 = vmatpush2.bf16.msra.mxu0 0
    %123 = vmatprep.subr.bf16.mxu0 0
    %124 = vmatpush2.bf16.msra.mxu0 0
    %125 = vmatprep.subr.bf16.mxu0 0
    %126 = vmatpush2.bf16.msra.mxu0 0
    %127 = vmatprep.subr.bf16.mxu0 0
    %128 = vmatpush2.bf16.msra.mxu0 0
    %129 = vmatprep.subr.bf16.mxu0 0
    %130 = vmatpush2.bf16.msra.mxu0 0
    %131 = vmatprep.subr.bf16.mxu0 0
    %132 = vmatpush2.bf16.msra.mxu0 0
    %133 = vmatprep.mubr.bf16.mxu0 0
    %134 = vmatmul.mubr.bf16.gmra.mxu0 %v99
    %v135 = vpop.f32.mrf.mxu0
    %v136 = vadd.f32 0.0, %v135
    %v137 = vpop.f32.mrf.mxu0
    %v138 = vpop.f32.mrf.mxu0
    %v139 = vadd.f32 0.0, %v138
    %v140 = vpop.f32.mrf.mxu0
    %141 = vdwg.mxu0
    %v142 = vadd.f32 %v56, %v136
    %v143 = vadd.f32 %v57, %v139
    %144 = vst [vmem:[#allocation2] sm:$0xff] %v142
    %145 = vst [vmem:[#allocation2 + $0x8] sm:$0xff] %v143
    // Predicated region
    $region34: #{tpu_custom_call.1} parent=1 // pred_check
      %p146 = pneg %p50
    $region35: #{tpu_custom_call.1} parent=1 // pred_check_branch
      %148 = sbr.rel (%p146) target = $region37
    $region36: #{tpu_custom_call.1} parent=1 // pred_region
      %v149 = vld [vmem:[#allocation2] sm:$0xff]
      %v150 = vld [vmem:[#allocation2 + $0x8] sm:$0xff]
      %v151 = vld [vmem:[%s2] sm:$0x1]
      %v153 = vlaneseq
      %v154 = vshrl.u32 %v153, 7
      %v155 = vsub.s32 0, %v154
      %v156 = vrot.slane %v151, %v155
      %v158 = vadd.f32 %v149, %v156
      %v159 = vadd.f32 %v150, %v156
      %v160 = vmax.f32 %v158, 0.0
      %v161 = vmax.f32 %v159, 0.0
      %162 = vadd.xlane.f32.xlu0 %v160
      %v163 = vpop.xlane.xlu0 %162
      %164 = vadd.xlane.f32.xlu0 %v161
      %v165 = vpop.xlane.xlu0 %164
      %v166 = vrcp.pop 128.0
      %v167 = vmul.f32 %v163, %v166
      %v168 = vmul.f32 %v165, %v166
      %v169 = vsub.f32 %v160, %v167
      %v170 = vsub.f32 %v161, %v168
      %v171 = vmul.f32 %v169, %v169
      %v172 = vmul.f32 %v170, %v170
      %173 = vadd.xlane.f32.xlu0 %v171
      %v174 = vpop.xlane.xlu0 %173
      %175 = vadd.xlane.f32.xlu0 %v172
      %v176 = vpop.xlane.xlu0 %175
      %v177 = vmul.f32 %v174, %v166
      %v178 = vmul.f32 %v176, %v166
      %v179 = vadd.f32 %v177, 1e-05
      %v180 = vadd.f32 %v178, 1e-05
      %v181 = vrsqrt.pop %v179
      %v182 = vrsqrt.pop %v180
      %v183 = vmul.f32 %v169, %v181
      %v184 = vmul.f32 %v170, %v182
      %v185 = vld [vmem:[%s3] sm:$0x1]
      %v187 = vlaneseq
      %v188 = vshrl.u32 %v187, 7
      %v189 = vsub.s32 0, %v188
      %v190 = vrot.slane %v185, %v189
      %v192 = vmul.f32 %v183, %v190
      %v193 = vmul.f32 %v184, %v190
      %v194 = vld [vmem:[%s4] sm:$0x1]
      %v196 = vlaneseq
      %v197 = vshrl.u32 %v196, 7
      %v198 = vsub.s32 0, %v197
      %v199 = vrot.slane %v194, %v198
      %v201 = vadd.f32 %v192, %v199
      %v202 = vadd.f32 %v193, %v199
      %v203 = vpack.c.bf16 %v202, %v201
      %v205 = vunpack.c.l.b16 %v203
      %v206 = vunpack.c.h.b16 %v203
      %v207 = vpack.c.b16 %v205, %v205
      %v208 = vpack.c.b16 %v206, %v206
      %211 = vst [vmem:[#allocation8] sm:$0xf] %v207
      %212 = vst [vmem:[#allocation8 + $0x4] sm:$0xf] %v208
    $region37: #{tpu_custom_call.1} parent=1 // pred_fallthru
      _
    // Predicated region
    $region38: #{tpu_custom_call.1} parent=1 // pred_check
      _
    $region39: #{tpu_custom_call.1} parent=1 // pred_check_branch
      %214 = sbr.rel (0) target = $region41
    $region40: #{tpu_custom_call.1} parent=1 // pred_region
      %s216 = ssub.s32 128, 128
      %217 = vsyncadd [#allocation5], %s216
      %s218 = sshll.u32 [#allocation8], 4
      %s219 = int_to_ptr.vmem [resolvable:$true] %s218
      %224 = dma.vmem_to_hbm [thread:$0]  %s219, 128, %s5, [#allocation5], 64, 64, 4
    $region41: #{tpu_custom_call.1} parent=1 // pred_fallthru
      _
    // Predicated region
    $region42: #{tpu_custom_call.1} parent=1 // pred_check
      _
    $region43: #{tpu_custom_call.1} parent=1 // pred_check_branch
      %226 = sbr.rel (0) target = $region45
    $region44: #{tpu_custom_call.1} parent=1 // pred_region
      %227 = dma.done [#allocation5], 128
    $region45: #{tpu_custom_call.1} parent=1 // pred_fallthru
      _
    %228 = vsyncpa [#allocation4], 1
    %229 = vsyncpa [#allocation7], 1
    %230 = vsyncpa [#allocation5], 1

</llo_original>
